<compile_context>
chip_gen: v6e
topology: v6e:2x2x1
jax: 0.10.0
libtpu: 0.0.40
codegen_flags: <defaults>
</compile_context>

<pallas_src>
from typing import Dict, Tuple

import jax
import jax.numpy as jnp
from jax import lax
from jax.experimental import pallas as pl
from jax.experimental.pallas import tpu as pltpu

# ----------------------------------------------------------------------------
# keys (stand-in for xequinet `keys` module)
# ----------------------------------------------------------------------------
TOTAL_ENERGY = "energy"
ENERGY_PER_ATOM = "energy_per_atom"
BATCH_PTR = "batch_ptr"
STRESS = "stress"
VIRIAL = "virial"
CELL = "cell"

_LANE = 128
_SUBLANE = 8
_ROW_ALIGN = 32                       # sublane granularity safe for f32/bf16/int8 blocks
_MAX_BLOCK_ROWS = 2048                # (2048,128) f32 = 1 MiB/block; 4 MiB double-buffered
_PALLAS_MIN_ELEMS = _ROW_ALIGN * _LANE  # below this, plain JAX beats launch overhead


# ----------------------------------------------------------------------------
# Pallas kernel: one pass over (pred, target) computing the three elementwise
# reduction statistics needed by every available loss:
#   sum |d| , sum d^2 , sum smoothl1(d)      with d = pred - target
# ----------------------------------------------------------------------------
def _stats_pallas(p2: jax.Array, t2: jax.Array, n: int, rows: int, block_rows: int):
    """Reduction over a (rows, 128) view.

    Returns a (3, 8, 128) f32 array of vreg-shaped partial sums:
      [0] = sum |d|,  [1] = sum d^2,  [2] = sum smoothl1(d),   d = p - t.
    """
    grid_steps = pl.cdiv(rows, block_rows)
    # Mask only when the last block is ragged (OOB rows hold unspecified data).
    needs_mask = (rows % block_rows) != 0 or (n != rows * _LANE)

    def kernel(p_ref, t_ref, o_ref):
        i = pl.program_id(0)

        @pl.when(i == 0)
        def _():
            o_ref[...] = jnp.zeros_like(o_ref)

        d = p_ref[...].astype(jnp.float32) - t_ref[...].astype(jnp.float32)
        if needs_mask:
            row = lax.broadcasted_iota(jnp.int32, d.shape, 0) + i * block_rows
            lane = lax.broadcasted_iota(jnp.int32, d.shape, 1)
            elem = row * _LANE + lane
            d = jnp.where(elem < n, d, 0.0)

        ad = jnp.abs(d)
        sq = d * d
        hub = jnp.where(ad < 1.0, 0.5 * sq, ad - 0.5)  # SmoothL1, beta = 1.0

        # Fold the block into one vreg-shaped (8,128) partial per stat: the
        # leading-axis sum lowers to plain VPU adds across vregs; the single
        # cross-lane/sublane reduce to a scalar happens once, outside Pallas.
        o_ref[0] += ad.reshape(-1, _SUBLANE, _LANE).sum(axis=0)
        o_ref[1] += sq.reshape(-1, _SUBLANE, _LANE).sum(axis=0)
        o_ref[2] += hub.reshape(-1, _SUBLANE, _LANE).sum(axis=0)

    itemsize = jnp.dtype(p2.dtype).itemsize
    return pl.pallas_call(
        kernel,
        out_shape=jax.ShapeDtypeStruct((3, _SUBLANE, _LANE), jnp.float32),
        grid_spec=pltpu.PrefetchScalarGridSpec(
            num_scalar_prefetch=0,
            grid=(grid_steps,),
            in_specs=[
                pl.BlockSpec((block_rows, _LANE), lambda i: (i, 0)),
                pl.BlockSpec((block_rows, _LANE), lambda i: (i, 0)),
            ],
            out_specs=pl.BlockSpec((3, _SUBLANE, _LANE), lambda i: (0, 0, 0)),
        ),
        compiler_params=pltpu.CompilerParams(
            # Single reduction axis accumulating into the resident output block.
            # TODO(synk): on v7x, add a leading "parallel" axis of size 2 with
            # per-core (8,128) partials to use both TensorCores.
            dimension_semantics=("arbitrary",),
        ),
        cost_estimate=pl.CostEstimate(
            flops=10 * rows * _LANE,
            transcendentals=0,
            bytes_accessed=2 * rows * _LANE * itemsize + 3 * _SUBLANE * _LANE * 4,
        ),
    )(p2, t2)


def _loss_stats(pred: jax.Array, target: jax.Array):
    """Returns (sum|d|, sum d^2, sum smoothl1(d), n_elements) as f32 scalars."""
    p = pred.reshape(-1)
    t = target.reshape(-1)
    n = p.shape[0]

    if n < _PALLAS_MIN_ELEMS:
        # Tiny per-task tensors (energy, virial): a pallas_call launch + pipeline
        # fill dwarfs the work, so reduce in plain JAX.
        d = p.astype(jnp.float32) - t.astype(jnp.float32)
        ad = jnp.abs(d)
        sq = d * d
        hub = jnp.where(ad < 1.0, 0.5 * sq, ad - 0.5)
        return jnp.sum(ad), jnp.sum(sq), jnp.sum(hub), jnp.float32(n)

    pad = (-n) % _LANE
    if pad:
        # TODO(synk): this <128-element tail pad still makes XLA copy the array;
        # a fully copy-free path would need a 1-D pl.ANY ref + manual DMA.
        p = jnp.pad(p, (0, pad))
        t = jnp.pad(t, (0, pad))
    rows = (n + pad) // _LANE
    block_rows = min(_MAX_BLOCK_ROWS, (rows // _ROW_ALIGN) * _ROW_ALIGN)

    partials = _stats_pallas(
        p.reshape(rows, _LANE), t.reshape(rows, _LANE), n, rows, block_rows
    )
    sums = jnp.sum(partials, axis=(1, 2))
    return sums[0], sums[1], sums[2], jnp.float32(n)


# ----------------------------------------------------------------------------
# Loss functions built on the shared stats (mean reductions, torch defaults)
# ----------------------------------------------------------------------------
def l1_loss(pred, target):
    s_abs, _, _, n = _loss_stats(pred, target)
    return s_abs / n


def mse_loss(pred, target):
    _, s_sq, _, n = _loss_stats(pred, target)
    return s_sq / n


def smoothl1_loss(pred, target):
    _, _, s_hub, n = _loss_stats(pred, target)
    return s_hub / n


def mat_criterion(pred, target):
    """MAE + sqrt(MSE)  -- MatCriterion.forward"""
    s_abs, s_sq, _, n = _loss_stats(pred, target)
    return s_abs / n + jnp.sqrt(s_sq / n)


_AVAILABLE_LOSSES = {
    "l1": l1_loss,
    "mae": l1_loss,
    "l2": mse_loss,
    "mse": mse_loss,
    "smoothl1": smoothl1_loss,
    "matloss": mat_criterion,
}


# ----------------------------------------------------------------------------
# WeightedLoss
# ----------------------------------------------------------------------------
class WeightedLoss:
    def __init__(self, loss_fn: str = "l2", **kwargs) -> None:
        self.loss_fn = _AVAILABLE_LOSSES[loss_fn.lower()]
        assert len(kwargs) > 0, "At least one task should be present"
        for k, v in kwargs.items():
            assert isinstance(v, float), f"Weight for {k} should be a float"
        self.weight_dict = kwargs

    def __call__(
        self, result: Dict[str, jax.Array], target: Dict[str, jax.Array]
    ) -> Tuple[jax.Array, Dict[str, jax.Array]]:
        # TODO(synk): multiple large tasks could be fused into one pallas_call
        # (per-task segment offsets via scalar prefetch); with one large tensor
        # per step (forces) the single-launch path below is already minimal.
        total_loss = jnp.float32(0.0)
        losses_dict = {}

        if ENERGY_PER_ATOM in self.weight_dict:
            assert result[TOTAL_ENERGY].shape == target[TOTAL_ENERGY].shape
            n_atoms = (target[BATCH_PTR][1:] - target[BATCH_PTR][:-1]).astype(
                jnp.float32
            )
            energy_per_atom_loss = self.loss_fn(
                result[TOTAL_ENERGY] / n_atoms, target[TOTAL_ENERGY] / n_atoms
            )
            total_loss += self.weight_dict[ENERGY_PER_ATOM] * energy_per_atom_loss
            losses_dict[ENERGY_PER_ATOM] = energy_per_atom_loss

        if STRESS in self.weight_dict:
            assert result[VIRIAL].shape == target[VIRIAL].shape
            # TODO(synk): 3x3 determinant is tiny per-graph glue; done in plain JAX.
            volume = jnp.abs(jnp.linalg.det(target[CELL])).reshape(-1, 1, 1)
            stress_loss = self.loss_fn(
                result[VIRIAL] / volume, target[VIRIAL] / volume
            )
            total_loss += self.weight_dict[STRESS] * stress_loss
            losses_dict[STRESS] = stress_loss

        for k, w in self.weight_dict.items():
            if k in {ENERGY_PER_ATOM, STRESS}:
                continue
            assert result[k].shape == target[k].shape
            loss = self.loss_fn(result[k], target[k])
            total_loss += w * loss
            losses_dict[k] = loss

        return total_loss, losses_dict


# ----------------------------------------------------------------------------
# demo
# ----------------------------------------------------------------------------
if __name__ == "__main__":
    key = jax.random.PRNGKey(0)
    k1, k2, k3, k4, k5, k6 = jax.random.split(key, 6)

    n_graphs = 2
    atoms_per_graph = jnp.array([1200, 848], dtype=jnp.int32)
    batch_ptr = jnp.concatenate(
        [jnp.zeros((1,), jnp.int32), jnp.cumsum(atoms_per_graph)]
    )  # [0, 1200, 2048]
    n_atoms_total = 2048  # forces has 2048*3 = 6144 elements -> Pallas path

    # predictions / targets (deterministic)
    pred_energy = jax.random.normal(k1, (n_graphs,), jnp.float32) * 3.0
    targ_energy = pred_energy + 0.1 * jax.random.normal(k2, (n_graphs,), jnp.float32)

    pred_virial = jax.random.normal(k3, (n_graphs, 3, 3), jnp.float32)
    targ_virial = pred_virial + 0.05 * jax.random.normal(k4, (n_graphs, 3, 3), jnp.float32)

    cell = 3.0 * jnp.eye(3, dtype=jnp.float32)[None, :, :].repeat(n_graphs, axis=0)
    cell = cell + 0.1 * jax.random.normal(k5, (n_graphs, 3, 3), jnp.float32)

    pred_forces = jax.random.normal(k6, (n_atoms_total, 3), jnp.float32)
    targ_forces = pred_forces + 0.02 * jax.random.normal(
        jax.random.PRNGKey(7), (n_atoms_total, 3), jnp.float32
    )

    result = {
        TOTAL_ENERGY: pred_energy,
        VIRIAL: pred_virial,
        "forces": pred_forces,
    }
    target = {
        TOTAL_ENERGY: targ_energy,
        VIRIAL: targ_virial,
        CELL: cell,
        BATCH_PTR: batch_ptr,
        "forces": targ_forces,
    }

    # deterministic "parameters": per-task float weights, default loss_fn='l2'
    loss_mod = WeightedLoss(
        loss_fn="l2", energy_per_atom=1.0, stress=0.1, forces=10.0
    )

    total_loss, losses = loss_mod(result, target)
    total_loss = jax.block_until_ready(total_loss)
    for v in losses.values():
        jax.block_until_ready(v)

    # sanity check against plain-JAX reference
    def ref_mse(a, b):
        return jnp.mean((a - b) ** 2)

    n_at = (batch_ptr[1:] - batch_ptr[:-1]).astype(jnp.float32)
    vol = jnp.abs(jnp.linalg.det(cell)).reshape(-1, 1, 1)
    ref_total = (
        1.0 * ref_mse(pred_energy / n_at, targ_energy / n_at)
        + 0.1 * ref_mse(pred_virial / vol, targ_virial / vol)
        + 10.0 * ref_mse(pred_forces, targ_forces)
    )
    assert jnp.allclose(total_loss, ref_total, rtol=1e-4, atol=1e-7), (
        total_loss,
        ref_total,
    )

    print("KERNEL_OK")
</pallas_src>

<mosaic_0001>
module attributes {stable_mosaic.version = 11 : i64} {
  func.func @kernel(%arg0: i32, %arg1: memref<32x128xf32, #tpu.memory_space<vmem>>, %arg2: memref<32x128xf32, #tpu.memory_space<vmem>>, %arg3: memref<3x8x128xf32, #tpu.memory_space<vmem>>) attributes {dimension_semantics = [#tpu.dimension_semantics<arbitrary>], iteration_bounds = array<i64: 2>, scalar_prefetch = 0 : i64, scratch_operands = 0 : i64, tpu.core_type = #tpu.core_type<tc>, window_params = [{transform_indices = @transform_0, window_bounds = array<i64: 32, 128>}, {transform_indices = @transform_1, window_bounds = array<i64: 32, 128>}, {pipeline_mode = #tpu.pipeline_mode<synchronous>, transform_indices = @transform_2, window_bounds = array<i64: 3, 8, 128>}]} {
    %c0_i32 = arith.constant 0 : i32
    %0 = arith.cmpi eq, %arg0, %c0_i32 : i32
    %1 = arith.extui %0 : i1 to i32
    %c0_i32_0 = arith.constant 0 : i32
    %2 = arith.cmpi ne, %1, %c0_i32_0 : i32
    scf.if %2 {
      %cst_26 = arith.constant 0.000000e+00 : f32
      %51 = vector.broadcast %cst_26 : f32 to vector<3x8x128xf32>
      %c0_27 = arith.constant 0 : index
      %c0_28 = arith.constant 0 : index
      %c0_29 = arith.constant 0 : index
      %52 = vector.load %arg3[%c0_27, %c0_28, %c0_29] : memref<3x8x128xf32, #tpu.memory_space<vmem>>, vector<3x8x128xf32>
      tpu.vector_store %arg3[%c0_27, %c0_28, %c0_29], %51 {strides = array<i32>} : memref<3x8x128xf32, #tpu.memory_space<vmem>>, vector<3x8x128xf32>,
    } else {
    }
    %c0 = arith.constant 0 : index
    %c0_1 = arith.constant 0 : index
    %3 = vector.load %arg1[%c0, %c0_1] : memref<32x128xf32, #tpu.memory_space<vmem>>, vector<32x128xf32>
    %c0_2 = arith.constant 0 : index
    %c0_3 = arith.constant 0 : index
    %4 = vector.load %arg2[%c0_2, %c0_3] : memref<32x128xf32, #tpu.memory_space<vmem>>, vector<32x128xf32>
    %5 = arith.subf %3, %4 : vector<32x128xf32>
    %6 = tpu.iota {dimensions = array<i32: 0>} : vector<32x128xi32>
    %c32_i32 = arith.constant 32 : i32
    %7 = arith.muli %arg0, %c32_i32 : i32
    %8 = vector.broadcast %7 : i32 to vector<32x128xi32>
    %9 = arith.addi %6, %8 : vector<32x128xi32>
    %10 = tpu.iota {dimensions = array<i32: 1>} : vector<32x128xi32>
    %c128_i32 = arith.constant 128 : i32
    %11 = vector.broadcast %c128_i32 : i32 to vector<32x128xi32>
    %12 = arith.muli %9, %11 : vector<32x128xi32>
    %13 = arith.addi %12, %10 : vector<32x128xi32>
    %c6144_i32 = arith.constant 6144 : i32
    %14 = vector.broadcast %c6144_i32 : i32 to vector<32x128xi32>
    %15 = arith.cmpi slt, %13, %14 : vector<32x128xi32>
    %cst = arith.constant 0.000000e+00 : f32
    %16 = vector.broadcast %cst : f32 to vector<32x128xf32>
    %17 = arith.select %15, %5, %16 : vector<32x128xi1>, vector<32x128xf32>
    %18 = math.absf %17 : vector<32x128xf32>
    %19 = arith.mulf %17, %17 : vector<32x128xf32>
    %cst_4 = arith.constant 1.000000e+00 : f32
    %20 = vector.broadcast %cst_4 : f32 to vector<32x128xf32>
    %21 = arith.cmpf olt, %18, %20 : vector<32x128xf32>
    %cst_5 = arith.constant 5.000000e-01 : f32
    %22 = vector.broadcast %cst_5 : f32 to vector<32x128xf32>
    %23 = arith.mulf %22, %19 : vector<32x128xf32>
    %cst_6 = arith.constant 5.000000e-01 : f32
    %24 = vector.broadcast %cst_6 : f32 to vector<32x128xf32>
    %25 = arith.subf %18, %24 : vector<32x128xf32>
    %26 = arith.select %21, %23, %25 : vector<32x128xi1>, vector<32x128xf32>
    %c0_7 = arith.constant 0 : index
    %c0_8 = arith.constant 0 : index
    %c0_9 = arith.constant 0 : index
    %27 = vector.load %arg3[%c0_7, %c0_8, %c0_9] : memref<3x8x128xf32, #tpu.memory_space<vmem>>, vector<1x8x128xf32>
    %28 = vector.shape_cast %27 : vector<1x8x128xf32> to vector<8x128xf32>
    %29 = vector.shape_cast %18 : vector<32x128xf32> to vector<4x8x128xf32>
    %cst_10 = arith.constant dense<0.000000e+00> : vector<8x128xf32>
    %30 = vector.multi_reduction <add>, %29, %cst_10 [0] : vector<4x8x128xf32> to vector<8x128xf32>
    %31 = arith.addf %28, %30 : vector<8x128xf32>
    %c0_11 = arith.constant 0 : index
    %c0_12 = arith.constant 0 : index
    %c0_13 = arith.constant 0 : index
    %32 = vector.load %arg3[%c0_11, %c0_12, %c0_13] : memref<3x8x128xf32, #tpu.memory_space<vmem>>, vector<1x8x128xf32>
    %33 = vector.shape_cast %32 : vector<1x8x128xf32> to vector<8x128xf32>
    %34 = vector.shape_cast %31 : vector<8x128xf32> to vector<1x8x128xf32>
    tpu.vector_store %arg3[%c0_11, %c0_12, %c0_13], %34 {strides = array<i32>} : memref<3x8x128xf32, #tpu.memory_space<vmem>>, vector<1x8x128xf32>,
    %c1 = arith.constant 1 : index
    %c0_14 = arith.constant 0 : index
    %c0_15 = arith.constant 0 : index
    %35 = vector.load %arg3[%c1, %c0_14, %c0_15] : memref<3x8x128xf32, #tpu.memory_space<vmem>>, vector<1x8x128xf32>
    %36 = vector.shape_cast %35 : vector<1x8x128xf32> to vector<8x128xf32>
    %37 = vector.shape_cast %19 : vector<32x128xf32> to vector<4x8x128xf32>
    %cst_16 = arith.constant dense<0.000000e+00> : vector<8x128xf32>
    %38 = vector.multi_reduction <add>, %37, %cst_16 [0] : vector<4x8x128xf32> to vector<8x128xf32>
    %39 = arith.addf %36, %38 : vector<8x128xf32>
    %c1_17 = arith.constant 1 : index
    %c0_18 = arith.constant 0 : index
    %c0_19 = arith.constant 0 : index
    %40 = vector.load %arg3[%c1_17, %c0_18, %c0_19] : memref<3x8x128xf32, #tpu.memory_space<vmem>>, vector<1x8x128xf32>
    %41 = vector.shape_cast %40 : vector<1x8x128xf32> to vector<8x128xf32>
    %42 = vector.shape_cast %39 : vector<8x128xf32> to vector<1x8x128xf32>
    tpu.vector_store %arg3[%c1_17, %c0_18, %c0_19], %42 {strides = array<i32>} : memref<3x8x128xf32, #tpu.memory_space<vmem>>, vector<1x8x128xf32>,
    %c2 = arith.constant 2 : index
    %c0_20 = arith.constant 0 : index
    %c0_21 = arith.constant 0 : index
    %43 = vector.load %arg3[%c2, %c0_20, %c0_21] : memref<3x8x128xf32, #tpu.memory_space<vmem>>, vector<1x8x128xf32>
    %44 = vector.shape_cast %43 : vector<1x8x128xf32> to vector<8x128xf32>
    %45 = vector.shape_cast %26 : vector<32x128xf32> to vector<4x8x128xf32>
    %cst_22 = arith.constant dense<0.000000e+00> : vector<8x128xf32>
    %46 = vector.multi_reduction <add>, %45, %cst_22 [0] : vector<4x8x128xf32> to vector<8x128xf32>
    %47 = arith.addf %44, %46 : vector<8x128xf32>
    %c2_23 = arith.constant 2 : index
    %c0_24 = arith.constant 0 : index
    %c0_25 = arith.constant 0 : index
    %48 = vector.load %arg3[%c2_23, %c0_24, %c0_25] : memref<3x8x128xf32, #tpu.memory_space<vmem>>, vector<1x8x128xf32>
    %49 = vector.shape_cast %48 : vector<1x8x128xf32> to vector<8x128xf32>
    %50 = vector.shape_cast %47 : vector<8x128xf32> to vector<1x8x128xf32>
    tpu.vector_store %arg3[%c2_23, %c0_24, %c0_25], %50 {strides = array<i32>} : memref<3x8x128xf32, #tpu.memory_space<vmem>>, vector<1x8x128xf32>,
    return
  }
  func.func @transform_0(%arg0: i32) -> (i32, i32) {
    %c0_i32 = arith.constant 0 : i32
    %c0_i32_0 = arith.constant 0 : i32
    return %arg0, %c0_i32 : i32, i32
  }
  func.func @transform_1(%arg0: i32) -> (i32, i32) {
    %c0_i32 = arith.constant 0 : i32
    %c0_i32_0 = arith.constant 0 : i32
    return %arg0, %c0_i32 : i32, i32
  }
  func.func @transform_2(%arg0: i32) -> (i32, i32, i32) {
    %c0_i32 = arith.constant 0 : i32
    %c0_i32_0 = arith.constant 0 : i32
    %c0_i32_1 = arith.constant 0 : i32
    %c0_i32_2 = arith.constant 0 : i32
    return %c0_i32, %c0_i32_0, %c0_i32_1 : i32, i32, i32
  }
}

</mosaic_0001>

<llo_original>
// kernel: tpu_custom_call.1
$region0: #{tpu_custom_call.1}
  #allocation0 [shape = 'u32[]', space=smem, size = 0x4, offset = 0x4, fixed_abs, tag = 'smem constant byte address 0x4 - core index']
  #allocation1 [shape = 'u32[144,128]{1,0:T(1,128)}', space=vmem, size = 0x12000, scoped, tag = 'internal scratch']
  %s0 = inlined_call_operand.hbm [shape: f32[48,128], index: 0, kind: input, shape index: {}]
  %s1 = inlined_call_operand.hbm [shape: f32[48,128], index: 1, kind: input, shape index: {}]
  %s2 = inlined_call_operand.hbm [shape: f32[3,8,128], index: 2, kind: output, shape index: {}]
  %s3 = sld [smem:[#allocation0]]
  $region53: #{tpu_custom_call.1} parent=0
    _
  %s5 = ssub.s32 1, %s3
  %s6 = scalar_select 0, %s5, %s3
  $region1: #{tpu_custom_call.1} parent=0
    #allocation2 [shape = 'u8[32768]{0}', space=vmem, size = 0x8000, scoped, tag = 'input window, operand 0']
    #allocation3 [shape = 's32[2]{0}', space=sflag, size = 0x8, scoped, tag = 'scoped memory for tpu_custom_call.1']
    #allocation4 [shape = 's32[2]{0}', space=sflag, size = 0x8, scoped, tag = 'scoped memory for tpu_custom_call.1']
    #allocation5 [shape = 'u8[32768]{0}', space=vmem, size = 0x8000, scoped, tag = 'input window, operand 1']
    #allocation6 [shape = 's32[2]{0}', space=sflag, size = 0x8, scoped, tag = 'scoped memory for tpu_custom_call.1']
    #allocation7 [shape = 'u8[12288]{0}', space=vmem, size = 0x3000, scoped, tag = 'output window, operand 0, single buffered']
    %7 = vsyncpa [#allocation3], 0
    %s8 = scalar_lea.sflag [#allocation3], 1
    %9 = vsyncpa %s8, 0
    %10 = vsyncpa [#allocation6], 0
    %s11 = scalar_lea.sflag [#allocation6], 1
    %12 = vsyncpa %s11, 0
    %13 = vsyncpa [#allocation4], 0
    loop: start=0, step=1, limit=4
    $region2: #{tpu_custom_call.1} parent=1 // loop_pre_header
      _
    $region3: #{tpu_custom_call.1} parent=1 // loop_header
      %s15 = sphi 0, %s19
      %p16 = scmp.ge.s32.totalorder %s15, 4
      %s25 = sphi 0, %s27
      %s28 = sphi 0, %s25
      %s29 = sphi 0, %s28
      %s45 = sphi 0, %s29
      %s51 = sphi 0, %s53
      %s54 = sphi 0, %s51
      %s55 = sphi 0, %s54
      %s71 = sphi 0, %s55
      %s75 = sphi 0, %s75
      %s77 = sphi 0, %s75
      %s78 = sphi 0, %s77
      %s92 = sphi 0, %s78
    $region4: #{tpu_custom_call.1} parent=1 // loop_header_branch
      %18 = sbr.rel (%p16) target = $region8
    $region5: #{tpu_custom_call.1} parent=1 // loop_body
      %s20 = ssub.s32 %s15, 1
      %s21 = ssub.s32 %s15, 2
      %s22 = sadd.s32 %s15, 1
      %s23 = ssub.s32 %s15, %s22
      %p24 = scmp.eq.s32.totalorder %s23, 0
      %s26 = sadd.s32 %s25, 1
      %s27 = scalar_select %p24, %s25, %s26
      %p30 = pneg %p24
      %p31 = scmp.eq.s32.totalorder %s15, 1
      %p32 = por %p30, %p31
      %p33 = scmp.ne.s32.totalorder %s25, %s28
      %p34 = scmp.eq.s32.totalorder %s15, 0
      %p35 = por %p33, %p34
      %p36 = scmp.ne.s32.totalorder %s25, %s28
      %p37 = scmp.eq.s32.totalorder %s20, 1
      %p38 = por %p36, %p37
      %p39 = scmp.ne.s32.totalorder %s28, %s29
      %p40 = scmp.eq.s32.totalorder %s20, 0
      %p41 = por %p39, %p40
      %p42 = scmp.ne.s32.totalorder %s28, %s29
      %p43 = scmp.eq.s32.totalorder %s21, 1
      %p44 = por %p42, %p43
      %p46 = scmp.ne.s32.totalorder %s29, %s45
      %p47 = scmp.eq.s32.totalorder %s21, 0
      %p48 = por %p46, %p47
      %s49 = ssub.s32 %s15, %s22
      %p50 = scmp.eq.s32.totalorder %s49, 0
      %s52 = sadd.s32 %s51, 1
      %s53 = scalar_select %p50, %s51, %s52
      %p56 = pneg %p50
      %p57 = scmp.eq.s32.totalorder %s15, 1
      %p58 = por %p56, %p57
      %p59 = scmp.ne.s32.totalorder %s51, %s54
      %p60 = scmp.eq.s32.totalorder %s15, 0
      %p61 = por %p59, %p60
      %p62 = scmp.ne.s32.totalorder %s51, %s54
      %p63 = scmp.eq.s32.totalorder %s20, 1
      %p64 = por %p62, %p63
      %p65 = scmp.ne.s32.totalorder %s54, %s55
      %p66 = scmp.eq.s32.totalorder %s20, 0
      %p67 = por %p65, %p66
      %p68 = scmp.ne.s32.totalorder %s54, %s55
      %p69 = scmp.eq.s32.totalorder %s21, 1
      %p70 = por %p68, %p69
      %p72 = scmp.ne.s32.totalorder %s55, %s71
      %p73 = scmp.eq.s32.totalorder %s21, 0
      %p74 = por %p72, %p73
      %s76 = sadd.s32 %s75, 1
      %p79 = scmp.eq.s32.totalorder %s15, 1
      %p80 = scmp.ne.s32.totalorder %s75, %s77
      %p81 = scmp.eq.s32.totalorder %s15, 0
      %p82 = por %p80, %p81
      %p83 = scmp.ne.s32.totalorder %s75, %s77
      %p84 = scmp.eq.s32.totalorder %s20, 1
      %p85 = por %p83, %p84
      %p86 = scmp.ne.s32.totalorder %s77, %s78
      %p87 = scmp.eq.s32.totalorder %s20, 0
      %p88 = por %p86, %p87
      %p89 = scmp.ne.s32.totalorder %s77, %s78
      %p90 = scmp.eq.s32.totalorder %s21, 1
      %p91 = por %p89, %p90
      %p93 = scmp.ne.s32.totalorder %s78, %s92
      %p94 = scmp.eq.s32.totalorder %s21, 0
      %p95 = por %p93, %p94
      %p96 = scmp.le.s32.totalorder 1, %s15
      %p97 = scmp.lt.s32.totalorder %s15, 3
      %p98 = pnand %p96, %p97
      %p99 = pneg %p98
      // Predicated region
      $region9: #{tpu_custom_call.1} parent=5 // pred_check
        _
      $region10: #{tpu_custom_call.1} parent=5 // pred_check_branch
        %101 = sbr.rel (%p98) target = $region12
      $region11: #{tpu_custom_call.1} parent=5 // pred_region
        %s102 = ssub.s32 %s15, 1
      $region12: #{tpu_custom_call.1} parent=5 // pred_fallthru
        _
      %p103 = scmp.lt.s32.totalorder %s15, 2
      // Predicated region
      $region13: #{tpu_custom_call.1} parent=5 // pred_check
        %p104 = pneg %p103
      $region14: #{tpu_custom_call.1} parent=5 // pred_check_branch
        %106 = sbr.rel (%p104) target = $region16
      $region15: #{tpu_custom_call.1} parent=5 // pred_region
        // Predicated region
        $region17: #{tpu_custom_call.1} parent=15 // pred_check
          %p107 = pneg %p35
        $region18: #{tpu_custom_call.1} parent=15 // pred_check_branch
          %109 = sbr.rel (%p107) target = $region20
        $region19: #{tpu_custom_call.1} parent=15 // pred_region
          %s110 = sand.u32 %s25, 1
          %s111 = scalar_lea.sflag [#allocation3], %s110
          %s112 = sand.u32 %s25, 1
          %s113 = smul.addr %s112, 32
          %s114 = scalar_lea.vmem [#allocation2], %s113
          %s115 = smul.u32 4, %s15
          %s116 = ssub.s32 6, %s115
          %p117 = scmp.lt.s32.totalorder %s116, 4
          %s118 = scalar_select %p117, %s116, 4
          %s119 = smul.u32 128, %s118
          %s121 = ssub.s32 512, %s119
          %122 = vsyncadd %s111, %s121
          %p123 = scmp.ne.s32.totalorder 0, %s119
          %s124 = smul.addr %s115, 128
          %s125 = scalar_lea.hbm %s0, %s124
          %s126 = smul.u32 8, %s118
          %s127 = sshll.u32 %s114, 4
          %s128 = int_to_ptr.vmem [resolvable:$true] %s127
          %s129 = sshll.u32 %s126, 4
          %133 = dma.hbm_to_vmem [thread:$0]  (%p123), %s125, %s129, %s128, %s111, 128, 128, 8
        $region20: #{tpu_custom_call.1} parent=15 // pred_fallthru
          _
        // Predicated region
        $region21: #{tpu_custom_call.1} parent=15 // pred_check
          %p134 = pneg %p61
        $region22: #{tpu_custom_call.1} parent=15 // pred_check_branch
          %136 = sbr.rel (%p134) target = $region24
        $region23: #{tpu_custom_call.1} parent=15 // pred_region
          %s137 = sand.u32 %s51, 1
          %s138 = scalar_lea.sflag [#allocation6], %s137
          %s139 = sand.u32 %s51, 1
          %s140 = smul.addr %s139, 32
          %s141 = scalar_lea.vmem [#allocation5], %s140
          %s142 = smul.u32 4, %s15
          %s143 = ssub.s32 6, %s142
          %p144 = scmp.lt.s32.totalorder %s143, 4
          %s145 = scalar_select %p144, %s143, 4
          %s146 = smul.u32 128, %s145
          %s148 = ssub.s32 512, %s146
          %149 = vsyncadd %s138, %s148
          %p150 = scmp.ne.s32.totalorder 0, %s146
          %s151 = smul.addr %s142, 128
          %s152 = scalar_lea.hbm %s1, %s151
          %s153 = smul.u32 8, %s145
          %s154 = sshll.u32 %s141, 4
          %s155 = int_to_ptr.vmem [resolvable:$true] %s154
          %s156 = sshll.u32 %s153, 4
          %160 = dma.hbm_to_vmem [thread:$0]  (%p150), %s152, %s156, %s155, %s138, 128, 128, 8
        $region24: #{tpu_custom_call.1} parent=15 // pred_fallthru
          _
      $region16: #{tpu_custom_call.1} parent=5 // pred_fallthru
        _
      %p161 = scmp.le.s32.totalorder 1, %s15
      %p162 = scmp.lt.s32.totalorder %s15, 3
      %p163 = pnand %p161, %p162
      %p164 = pneg %p163
      // Predicated region
      $region25: #{tpu_custom_call.1} parent=5 // pred_check
        _
      $region26: #{tpu_custom_call.1} parent=5 // pred_check_branch
        %166 = sbr.rel (%p163) target = $region28
      $region27: #{tpu_custom_call.1} parent=5 // pred_region
        %s167 = ssub.s32 %s15, 1
        %s168 = sand.u32 %s28, 1
        %s169 = scalar_lea.sflag [#allocation3], %s168
        %s170 = sand.u32 %s28, 1
        %s171 = smul.addr %s170, 32
        %s172 = scalar_lea.vmem [#allocation2], %s171
        // Predicated region
        $region29: #{tpu_custom_call.1} parent=27 // pred_check
          %p173 = pneg %p41
        $region30: #{tpu_custom_call.1} parent=27 // pred_check_branch
          %175 = sbr.rel (%p173) target = $region32
        $region31: #{tpu_custom_call.1} parent=27 // pred_region
          %176 = dma.done %s169, 512
        $region32: #{tpu_custom_call.1} parent=27 // pred_fallthru
          _
        %s177 = sand.u32 %s54, 1
        %s178 = scalar_lea.sflag [#allocation6], %s177
        %s179 = sand.u32 %s54, 1
        %s180 = smul.addr %s179, 32
        %s181 = scalar_lea.vmem [#allocation5], %s180
        // Predicated region
        $region33: #{tpu_custom_call.1} parent=27 // pred_check
          %p182 = pneg %p67
        $region34: #{tpu_custom_call.1} parent=27 // pred_check_branch
          %184 = sbr.rel (%p182) target = $region36
        $region35: #{tpu_custom_call.1} parent=27 // pred_region
          %185 = dma.done %s178, 512
        $region36: #{tpu_custom_call.1} parent=27 // pred_fallthru
          _
        %s186 = sand.u32 %s28, 1
        %s187 = scalar_lea.sflag [#allocation3], %s186
        %s188 = sand.u32 %s28, 1
        %s189 = smul.addr %s188, 32
        %s190 = scalar_lea.vmem [#allocation2], %s189
        %p191 = pneg %p41
        %p192 = pneg %p38
        %s193 = sand.u32 %s54, 1
        %s194 = scalar_lea.sflag [#allocation6], %s193
        %s195 = sand.u32 %s54, 1
        %s196 = smul.addr %s195, 32
        %s197 = scalar_lea.vmem [#allocation5], %s196
        %p198 = pneg %p67
        %p199 = pneg %p64
        %p200 = pneg %p88
        %p201 = pneg %p85
        %s202 = smul.u32 4, %s20
        %s203 = ssub.s32 6, %s202
        %p204 = scmp.lt.s32.totalorder %s203, 4
        %s205 = scalar_select %p204, %s203, 4
        %s206 = smul.u32 128, %s205
        %s207 = smul.u32 4, %s20
        %s208 = ssub.s32 6, %s207
        %p209 = scmp.lt.s32.totalorder %s208, 4
        %s210 = scalar_select %p209, %s208, 4
        %s211 = smul.u32 128, %s210
        %p212 = scmp.eq.s32.totalorder %s20, 0
        // Predicated region
        $region37: #{tpu_custom_call.1} parent=27 // pred_check
          %p213 = pneg %p212
        $region38: #{tpu_custom_call.1} parent=27 // pred_check_branch
          %215 = sbr.rel (%p213) target = $region40
        $region39: #{tpu_custom_call.1} parent=27 // pred_region
          %216 = vst [vmem:[#allocation7] sm:$0xff] 0.0
          %217 = vst [vmem:[#allocation7 + $0x8] sm:$0xff] 0.0
          %218 = vst [vmem:[#allocation7 + $0x10] sm:$0xff] 0.0
        $region40: #{tpu_custom_call.1} parent=27 // pred_fallthru
          _
        %v219 = vld [vmem:[%s172] sm:$0xff]
        %v220 = vld [vmem:[%s172 + $0x8] sm:$0xff]
        %v221 = vld [vmem:[%s172 + $0x10] sm:$0xff]
        %v222 = vld [vmem:[%s172 + $0x18] sm:$0xff]
        %v223 = vld [vmem:[%s181] sm:$0xff]
        %v224 = vld [vmem:[%s181 + $0x8] sm:$0xff]
        %v225 = vld [vmem:[%s181 + $0x10] sm:$0xff]
        %v226 = vld [vmem:[%s181 + $0x18] sm:$0xff]
        %v227 = vsub.f32 %v219, %v223
        %v228 = vsub.f32 %v220, %v224
        %v229 = vsub.f32 %v221, %v225
        %v230 = vsub.f32 %v222, %v226
        %v231 = vlaneseq
        %v232 = vshrl.u32 %v231, 7
        %v233 = vadd.s32 %v232, 8
        %v234 = vadd.s32 %v232, 16
        %v235 = vadd.s32 %v232, 24
        %s236 = smul.u32 %s20, 32
        %v237 = vstv %s236
        %v238 = vadd.s32 %v232, %v237
        %v239 = vadd.s32 %v233, %v237
        %v240 = vadd.s32 %v234, %v237
        %v241 = vadd.s32 %v235, %v237
        %v242 = vlaneseq
        %v243 = vand.u32 %v242, 127
        %v244 = vmul.u32 %v238, 128
        %v245 = vmul.u32 %v239, 128
        %v246 = vmul.u32 %v240, 128
        %v247 = vmul.u32 %v241, 128
        %v248 = vadd.s32 %v244, %v243
        %v249 = vadd.s32 %v245, %v243
        %v250 = vadd.s32 %v246, %v243
        %v251 = vadd.s32 %v247, %v243
        %vm252 = vcmp.lt.s32.totalorder %v248, 6144
        %vm253 = vcmp.lt.s32.totalorder %v249, 6144
        %vm254 = vcmp.lt.s32.totalorder %v250, 6144
        %vm255 = vcmp.lt.s32.totalorder %v251, 6144
        %v256 = vsel %vm252, %v227, 0.0
        %v257 = vsel %vm253, %v228, 0.0
        %v258 = vsel %vm254, %v229, 0.0
        %v259 = vsel %vm255, %v230, 0.0
        %v260 = vand.u32 2147483647, %v256
        %v261 = vand.u32 2147483647, %v257
        %v262 = vand.u32 2147483647, %v258
        %v263 = vand.u32 2147483647, %v259
        %v264 = vmul.f32 %v256, %v256
        %v265 = vmul.f32 %v257, %v257
        %v266 = vmul.f32 %v258, %v258
        %v267 = vmul.f32 %v259, %v259
        %vm268 = vcmp.lt.f32.partialorder %v260, 1.0
        %vm269 = vcmp.lt.f32.partialorder %v261, 1.0
        %vm270 = vcmp.lt.f32.partialorder %v262, 1.0
        %vm271 = vcmp.lt.f32.partialorder %v263, 1.0
        %v272 = vmul.f32 %v264, 0.5
        %v273 = vmul.f32 %v265, 0.5
        %v274 = vmul.f32 %v266, 0.5
        %v275 = vmul.f32 %v267, 0.5
        %v276 = vsub.f32 %v260, 0.5
        %v277 = vsub.f32 %v261, 0.5
        %v278 = vsub.f32 %v262, 0.5
        %v279 = vsub.f32 %v263, 0.5
        %v280 = vsel %vm268, %v272, %v276
        %v281 = vsel %vm269, %v273, %v277
        %v282 = vsel %vm270, %v274, %v278
        %v283 = vsel %vm271, %v275, %v279
        %v284 = vld [vmem:[#allocation7] sm:$0xff]
        %v285 = vadd.f32 %v260, %v261
        %v286 = vadd.f32 %v285, %v262
        %v287 = vadd.f32 %v286, %v263
        %v288 = vadd.f32 %v284, %v287
        %289 = vst [vmem:[#allocation7] sm:$0xff] %v288
        %s290 = scalar_lea.vmem [#allocation7], 8
        %v291 = vld [vmem:[%s290] sm:$0xff]
        %v292 = vadd.f32 %v264, %v265
        %v293 = vadd.f32 %v292, %v266
        %v294 = vadd.f32 %v293, %v267
        %v295 = vadd.f32 %v291, %v294
        %296 = vst [vmem:[%s290] sm:$0xff] %v295
        %s297 = scalar_lea.vmem [#allocation7], 16
        %v298 = vld [vmem:[%s297] sm:$0xff]
        %v299 = vadd.f32 %v280, %v281
        %v300 = vadd.f32 %v299, %v282
        %v301 = vadd.f32 %v300, %v283
        %v302 = vadd.f32 %v298, %v301
        %303 = vst [vmem:[%s297] sm:$0xff] %v302
        // Predicated region
        $region41: #{tpu_custom_call.1} parent=27 // pred_check
          %p304 = pneg %p85
        $region42: #{tpu_custom_call.1} parent=27 // pred_check_branch
          %306 = sbr.rel (%p304) target = $region44
        $region43: #{tpu_custom_call.1} parent=27 // pred_region
          %s308 = ssub.s32 384, 384
          %309 = vsyncadd [#allocation4], %s308
          %s310 = sshll.u32 [#allocation7], 4
          %s311 = int_to_ptr.vmem [resolvable:$true] %s310
          %316 = dma.vmem_to_hbm [thread:$0]  %s311, 384, %s2, [#allocation4], 128, 128, 8
        $region44: #{tpu_custom_call.1} parent=27 // pred_fallthru
          _
        // Predicated region
        $region45: #{tpu_custom_call.1} parent=27 // pred_check
          %p317 = pneg %p85
        $region46: #{tpu_custom_call.1} parent=27 // pred_check_branch
          %319 = sbr.rel (%p317) target = $region48
        $region47: #{tpu_custom_call.1} parent=27 // pred_region
          %320 = dma.done [#allocation4], 384
        $region48: #{tpu_custom_call.1} parent=27 // pred_fallthru
          _
      $region28: #{tpu_custom_call.1} parent=5 // pred_fallthru
        _
      %p321 = scmp.le.s32.totalorder 2, %s15
      // Predicated region
      $region49: #{tpu_custom_call.1} parent=5 // pred_check
        %p322 = pneg %p321
      $region50: #{tpu_custom_call.1} parent=5 // pred_check_branch
        %324 = sbr.rel (%p322) target = $region52
      $region51: #{tpu_custom_call.1} parent=5 // pred_region
        %s325 = ssub.s32 %s15, 2
      $region52: #{tpu_custom_call.1} parent=5 // pred_fallthru
        _
    $region6: #{tpu_custom_call.1} parent=1 // loop_footer
      %s19 = sadd.s32 1, %s15
    $region7: #{tpu_custom_call.1} parent=1 // loop_footer_branch
      %14 = sbr.rel target = $region3
    $region8: #{tpu_custom_call.1} parent=1 // loop_exit
      _
    %326 = vsyncpa [#allocation3], 1
    %s327 = scalar_lea.sflag [#allocation3], 1
    %328 = vsyncpa %s327, 1
    %329 = vsyncpa [#allocation6], 1
    %s330 = scalar_lea.sflag [#allocation6], 1
    %331 = vsyncpa %s330, 1
    %332 = vsyncpa [#allocation4], 1
    %s333 = scalar_lea.sflag [#allocation4], 1
    %334 = vsyncpa %s333, 1

</llo_original>
